<compile_context>
chip_gen: v5e
topology: v5e:2x2
jax: 0.10.0
libtpu: 0.0.40
codegen_flags: <defaults>
</compile_context>

<pallas_src>
import functools
import numpy as np
import jax
import jax.numpy as jnp
from jax import lax
from jax.experimental import pallas as pl
from jax.experimental.pallas import tpu as pltpu

LRELU_SLOPE = 0.2
LRELU_GAIN = float(np.sqrt(2.0))   # bias_act def_gain for 'lrelu'
SEG = 128                          # lane-aligned segment for the fused affine output


# ----------------------------- fused Pallas kernel -------------------------

def block_kernel(pack_ref, wflat_ref, xcol_ref,      # packed params / conv weight / im2col const
                 y_ref, img_ref,                     # outputs (N*Cout, HW), (N*IMG, HW)
                 *, n, w_dim, cin, cout, img_ch, hw, kpad):
    f32 = jnp.float32
    two_w = 2 * w_dim

    # --- static row offsets inside the packed slab (must match wrapper order) ---
    r_ws = 0
    r_aw = r_ws + n
    r_ab = r_aw + two_w
    r_rgbw = r_ab + 1
    r_b1 = r_rgbw + img_ch
    r_meta = r_b1 + n * cout
    r_colid = r_meta + n * img_ch
    r_noise = r_colid + 1

    ws_cat = pack_ref[r_ws:r_aw, 0:two_w]              # (N, 2*w_dim)
    aff_w = pack_ref[r_aw:r_ab, 0:2 * SEG]             # (2*w_dim, 2*SEG) block-diag
    aff_b = pack_ref[r_ab:r_ab + 1, 0:2 * SEG]         # (1, 2*SEG)
    rgbw = pack_ref[r_rgbw:r_b1, 0:cout]               # (IMG, Cout)
    b1col = pack_ref[r_b1:r_meta, 0:1]                 # (N*Cout, 1) conv1 bias per row
    b2col = pack_ref[r_meta:r_colid, 0:1]              # (N*IMG, 1)  torgb bias per row
    rowid = pack_ref[r_meta:r_colid, 1:2]              # (N*IMG, 1)  sample id per img row
    colid = pack_ref[r_colid:r_colid + 1, 0:n * cout]  # (1, N*Cout) sample id per y row
    noise = pack_ref[r_noise:r_noise + 1, 0:hw]        # (1, HW)

    # --- FullyConnectedLayer forwards (linear act), fused into ONE GEMM ---
    #   s = [ws0 | ws1] @ blockdiag(a1w, a2w) + [a1b | a2b]
    s = jnp.dot(ws_cat, aff_w, preferred_element_type=f32) + aff_b     # (N, 2*SEG)
    s1 = s[:, 0:cin]                                                   # conv1 styles (N, Cin)
    s2 = s[:, SEG:SEG + cout]                                          # torgb styles (N, Cout)

    # --- conv1: modulate weights, ONE batched GEMM, demodulate at the output ---
    ntile = -(-kpad // cin)
    s1_rep = jnp.tile(s1, (1, ntile))[:, 0:kpad]                       # (N, Kpad) per-tap copies
    w_mod = wflat_ref[...][None, :, :] * s1_rep[:, None, :]            # (N, Cout, Kpad) f32
    lhs = w_mod.reshape(n * cout, kpad)                                # (N*Cout, Kpad) f32
    dcol = lax.rsqrt(jnp.sum(lhs * lhs, axis=1, keepdims=True) + 1e-8) # (N*Cout, 1) demod, f32

    rhs = xcol_ref[...]                                                # (Kpad, HW), batch-shared
    acc = jnp.dot(lhs.astype(rhs.dtype), rhs,
                  preferred_element_type=f32)                          # ONE GEMM: (N*Cout, HW)

    # epilogue: demod + noise + bias + lrelu*sqrt(2), all on the resident accumulator
    y = acc * dcol + noise + b1col
    y = jnp.where(y >= 0.0, y, LRELU_SLOPE * y) * LRELU_GAIN
    y_ref[...] = y                                                     # lane-dense full store

    # --- torgb: modulated 1x1 conv as ONE block-diagonal GEMM over the batch ---
    mod_rgb = (rgbw[None, :, :] * s2[:, None, :]).reshape(n * img_ch, cout)  # (N*IMG, Cout)
    big = jnp.tile(mod_rgb, (1, n))                                          # (N*IMG, N*Cout)
    lhs_rgb = jnp.where(rowid == colid, big, 0.0)                            # zero off-diag blocks
    img = jnp.dot(lhs_rgb, y, preferred_element_type=f32) + b2col            # (N*IMG, HW)
    img_ref[...] = img                                                       # lane-dense store


# ----------------------------- wrapper --------------------------------------

def synthesis_block_forward(ws, params, mxu_dtype=jnp.float32):
    # SynthesisBlock.forward with x=None, img=None (first block), noise_mode='const',
    # fused_modconv math expressed as modulated weights + output-side demodulation.
    N = ws.shape[0]
    const = params['const']                              # (C, R, R)
    C, R, _ = const.shape
    HW = R * R
    weight = params['conv1_weight']                      # (Cout, Cin, 3, 3)
    Cout = weight.shape[0]
    rgb_weight = params['torgb_weight']                  # (IMG, Cout, 1, 1)
    IMG = rgb_weight.shape[0]
    w_dim = ws.shape[-1]

    assert HW % 128 == 0, "toy/real StyleGAN2 resolutions give HW multiples of 128"
    assert C <= SEG and Cout <= SEG  # TODO(synk): widen affine segment for C > 128
    PACK_COLS = max(HW, 2 * SEG)
    Kpad = ((9 * C + 127) // 128) * 128                  # 288 -> 384 here (lane-aligned K)

    # Batch-invariant im2col of the learned constant — built ONCE, shared by all samples.
    cpad = jnp.pad(const, ((0, 0), (1, 1), (1, 1)))      # (C, R+2, R+2)
    taps = [cpad[:, dy:dy + R, dx:dx + R].reshape(C, HW)
            for dy in range(3) for dx in range(3)]
    xcol = jnp.concatenate(taps, axis=0)                                  # (9*Cin, HW)
    xcol_pad = jnp.pad(xcol, ((0, Kpad - 9 * C), (0, 0))).astype(mxu_dtype)  # (Kpad, HW)

    # conv1 weight flattened to match xcol's (tap, in-channel) row order, K zero-padded.
    w_flat = jnp.transpose(weight, (0, 2, 3, 1)).reshape(Cout, 9 * C)
    w_flat_pad = jnp.pad(w_flat, ((0, 0), (0, Kpad - 9 * C)))             # (Cout, Kpad) f32

    # FullyConnectedLayer params (lr_multiplier=1 -> weight_gain = 1/sqrt(in_features),
    # bias_gain = 1, linear activation).  torgb's extra 1/sqrt(Cout*1*1) conv gain is
    # folded into its affine output (valid because demodulate=False).
    a1w = (params['conv1_affine_w'] * (1.0 / np.sqrt(w_dim))).T           # (w_dim, Cin)
    a1b = params['conv1_affine_b'].reshape(-1)                            # (Cin,)
    a2w = (params['torgb_affine_w'] * (1.0 / np.sqrt(w_dim) / np.sqrt(Cout))).T
    a2b = (params['torgb_affine_b'] / np.sqrt(Cout)).reshape(-1)          # (Cout,)

    # Block-diagonal fused-affine weight/bias, lane-aligned segments [0:SEG) / [SEG:2*SEG).
    aff_w = jnp.zeros((2 * w_dim, 2 * SEG), jnp.float32)
    aff_w = aff_w.at[:w_dim, :C].set(a1w)
    aff_w = aff_w.at[w_dim:, SEG:SEG + Cout].set(a2w)
    aff_b = jnp.zeros((1, 2 * SEG), jnp.float32)
    aff_b = aff_b.at[0, :C].set(a1b)
    aff_b = aff_b.at[0, SEG:SEG + Cout].set(a2b)

    ws_cat = jnp.concatenate([ws[:, 0], ws[:, 1]], axis=1)                # (N, 2*w_dim)
    rgbw = rgb_weight[:, :, 0, 0]                                         # (IMG, Cout)
    noise_row = (params['noise_const'] * params['noise_strength']).reshape(1, HW)

    def padcols(x):
        return jnp.pad(x.astype(jnp.float32), ((0, 0), (0, PACK_COLS - x.shape[1])))

    # Per-row bias columns and block-diag index rows (avoid in-kernel relayouts).
    b1col = jnp.tile(params['conv1_bias'], (N,)).reshape(N * Cout, 1)     # conv row -> bias[c]
    meta = jnp.zeros((N * IMG, PACK_COLS), jnp.float32)
    meta = meta.at[:, 0].set(jnp.tile(params['torgb_bias'], (N,)))        # img row -> bias[o]
    meta = meta.at[:, 1].set(jnp.repeat(jnp.arange(N, dtype=jnp.float32), IMG))  # img row -> i
    colid = jnp.zeros((1, PACK_COLS), jnp.float32)
    colid = colid.at[0, :N * Cout].set(jnp.repeat(jnp.arange(N, dtype=jnp.float32), Cout))

    pack = jnp.concatenate([
        padcols(ws_cat),        # N rows
        padcols(aff_w),         # 2*w_dim rows
        padcols(aff_b),         # 1 row
        padcols(rgbw),          # IMG rows
        padcols(b1col),         # N*Cout rows
        meta,                   # N*IMG rows
        colid,                  # 1 row
        padcols(noise_row),     # 1 row
    ], axis=0)
    pad_rows = (-pack.shape[0]) % 8
    if pad_rows:
        pack = jnp.pad(pack, ((0, pad_rows), (0, 0)))

    def full_spec(shape):
        nd = len(shape)
        return pl.BlockSpec(tuple(shape), lambda i, _nd=nd: (0,) * _nd)

    itemsize = np.dtype(mxu_dtype).itemsize
    flops = (2 * N * (2 * w_dim) * (2 * SEG)          # fused affine GEMM
             + 2 * (N * Cout) * Kpad * HW             # conv GEMM
             + 2 * (N * IMG) * (N * Cout) * HW)       # torgb block-diag GEMM
    bytes_accessed = (pack.size * 4 + w_flat_pad.size * 4 + xcol_pad.size * itemsize
                      + (N * Cout * HW + N * IMG * HW) * 4)
    cost = pl.CostEstimate(flops=int(flops), transcendentals=int(N * Cout),
                           bytes_accessed=int(bytes_accessed))

    kernel = functools.partial(block_kernel, n=N, w_dim=w_dim, cin=C, cout=Cout,
                               img_ch=IMG, hw=HW, kpad=Kpad)
    y_flat, img = pl.pallas_call(
        kernel,
        out_shape=(jax.ShapeDtypeStruct((N * Cout, HW), jnp.float32),
                   jax.ShapeDtypeStruct((N * IMG, HW), jnp.float32)),
        grid=(1,),
        in_specs=[full_spec(pack.shape),
                  full_spec(w_flat_pad.shape),
                  full_spec(xcol_pad.shape)],
        out_specs=(full_spec((N * Cout, HW)), full_spec((N * IMG, HW))),
        compiler_params=pltpu.CompilerParams(dimension_semantics=("arbitrary",)),
        cost_estimate=cost,
    )(pack, w_flat_pad, xcol_pad)

    # Outputs are already (batch*channel, HW) row-ordered -> NCHW is a pure reshape.
    x_out = y_flat.reshape(N, Cout, R, R)
    img_out = img.reshape(N, IMG, R, R)
    return x_out, img_out


# ----------------------------- pure-JAX reference --------------------------

def ref_forward(ws, params):
    N = ws.shape[0]
    const = params['const']
    C, R, _ = const.shape
    x = jnp.broadcast_to(const[None], (N, C, R, R))
    # conv1 (fused modconv, demodulate)
    a_w, a_b = params['conv1_affine_w'], params['conv1_affine_b']
    s1 = ws[:, 0] @ (a_w.T * (1.0 / np.sqrt(a_w.shape[1]))) + a_b
    w = params['conv1_weight']
    w_mod = w[None] * s1[:, None, :, None, None]
    d = lax.rsqrt(jnp.sum(w_mod * w_mod, axis=(2, 3, 4)) + 1e-8)
    w_f = w_mod * d[:, :, None, None, None]

    def conv_one(xi, wi):
        return lax.conv_general_dilated(xi[None], wi, (1, 1), [(1, 1), (1, 1)],
                                        dimension_numbers=('NCHW', 'OIHW', 'NCHW'))[0]

    y = jax.vmap(conv_one)(x, w_f)
    y = y + (params['noise_const'] * params['noise_strength'])[None, None]
    y = y + params['conv1_bias'][None, :, None, None]
    y = jnp.where(y >= 0, y, LRELU_SLOPE * y) * LRELU_GAIN
    # torgb
    a_w2, a_b2 = params['torgb_affine_w'], params['torgb_affine_b']
    s2 = (ws[:, 1] @ (a_w2.T * (1.0 / np.sqrt(a_w2.shape[1]))) + a_b2) / np.sqrt(C)
    rgb_w = params['torgb_weight'][:, :, 0, 0]
    img = jnp.einsum('nchw,oc,nc->nohw', y, rgb_w, s2) + params['torgb_bias'][None, :, None, None]
    return y, img


# ----------------------------------- main -----------------------------------

if __name__ == "__main__":
    N, w_dim, C, R, IMG = 2, 32, 32, 16, 3
    key = jax.random.PRNGKey(0)
    ks = jax.random.split(key, 10)
    params = dict(
        const=jax.random.normal(ks[0], (C, R, R), jnp.float32),
        conv1_affine_w=jax.random.normal(ks[1], (C, w_dim), jnp.float32),
        conv1_affine_b=jnp.ones((C,), jnp.float32),                    # bias_init=1
        conv1_weight=jax.random.normal(ks[2], (C, C, 3, 3), jnp.float32),
        conv1_bias=0.1 * jax.random.normal(ks[3], (C,), jnp.float32),  # nonzero to exercise path
        noise_const=jax.random.normal(ks[4], (R, R), jnp.float32),
        noise_strength=jnp.float32(0.1),                               # nonzero to exercise noise path
        torgb_affine_w=jax.random.normal(ks[5], (C, w_dim), jnp.float32),
        torgb_affine_b=jnp.ones((C,), jnp.float32),                    # bias_init=1
        torgb_weight=jax.random.normal(ks[6], (IMG, C, 1, 1), jnp.float32),
        torgb_bias=0.1 * jax.random.normal(ks[7], (IMG,), jnp.float32),
    )
    ws = jax.random.normal(ks[8], (N, 2, w_dim), jnp.float32)          # (N, num_conv+num_torgb, w_dim)

    x_gold, img_gold = ref_forward(ws, params)

    # f32 MXU operands — tight tolerance (verifies semantics precisely).
    x_out, img_out = synthesis_block_forward(ws, params, mxu_dtype=jnp.float32)
    jax.block_until_ready((x_out, img_out))
    assert x_out.shape == (N, C, R, R) and x_out.dtype == jnp.float32
    assert img_out.shape == (N, IMG, R, R) and img_out.dtype == jnp.float32
    assert jnp.allclose(x_out, x_gold, atol=1e-3, rtol=1e-3)
    assert jnp.allclose(img_out, img_gold, atol=1e-3, rtol=1e-3)

    # bf16 MXU operands (fast path on v5e/v6e/v7x) — looser tolerance; style, demod
    # and epilogue math stays in f32.
    x_bf, img_bf = synthesis_block_forward(ws, params, mxu_dtype=jnp.bfloat16)
    jax.block_until_ready((x_bf, img_bf))
    assert jnp.allclose(x_bf, x_gold, atol=2.5e-1, rtol=5e-2)
    assert jnp.allclose(img_bf, img_gold, atol=2.5e-1, rtol=5e-2)

    print("KERNEL_OK")
</pallas_src>

<mosaic_0001>
module attributes {stable_mosaic.version = 11 : i64} {
  func.func @block_kernel(%arg0: i32, %arg1: memref<144x256xf32, #tpu.memory_space<vmem>>, %arg2: memref<32x384xf32, #tpu.memory_space<vmem>>, %arg3: memref<384x256xf32, #tpu.memory_space<vmem>>, %arg4: memref<64x256xf32, #tpu.memory_space<vmem>>, %arg5: memref<6x256xf32, #tpu.memory_space<vmem>>) attributes {dimension_semantics = [#tpu.dimension_semantics<arbitrary>], iteration_bounds = array<i64: 1>, scalar_prefetch = 0 : i64, scratch_operands = 0 : i64, tpu.core_type = #tpu.core_type<tc>, window_params = [{pipeline_mode = #tpu.pipeline_mode<synchronous>, transform_indices = @transform_0, window_bounds = array<i64: 144, 256>}, {pipeline_mode = #tpu.pipeline_mode<synchronous>, transform_indices = @transform_1, window_bounds = array<i64: 32, 384>}, {pipeline_mode = #tpu.pipeline_mode<synchronous>, transform_indices = @transform_2, window_bounds = array<i64: 384, 256>}, {pipeline_mode = #tpu.pipeline_mode<synchronous>, transform_indices = @transform_3, window_bounds = array<i64: 64, 256>}, {pipeline_mode = #tpu.pipeline_mode<synchronous>, transform_indices = @transform_4, window_bounds = array<i64: 6, 256>}]} {
    %c0 = arith.constant 0 : index
    %c0_0 = arith.constant 0 : index
    %0 = vector.load %arg1[%c0, %c0_0] : memref<144x256xf32, #tpu.memory_space<vmem>>, vector<2x64xf32>
    %c2 = arith.constant 2 : index
    %c0_1 = arith.constant 0 : index
    %1 = vector.load %arg1[%c2, %c0_1] : memref<144x256xf32, #tpu.memory_space<vmem>>, vector<64x256xf32>
    %c66 = arith.constant 66 : index
    %c0_2 = arith.constant 0 : index
    %2 = vector.load %arg1[%c66, %c0_2] : memref<144x256xf32, #tpu.memory_space<vmem>>, vector<1x256xf32>
    %c67 = arith.constant 67 : index
    %c0_3 = arith.constant 0 : index
    %3 = vector.load %arg1[%c67, %c0_3] : memref<144x256xf32, #tpu.memory_space<vmem>>, vector<3x32xf32>
    %c70 = arith.constant 70 : index
    %c0_4 = arith.constant 0 : index
    %4 = vector.load %arg1[%c70, %c0_4] : memref<144x256xf32, #tpu.memory_space<vmem>>, vector<64x1xf32>
    %c134 = arith.constant 134 : index
    %c0_5 = arith.constant 0 : index
    %5 = vector.load %arg1[%c134, %c0_5] : memref<144x256xf32, #tpu.memory_space<vmem>>, vector<6x1xf32>
    %c134_6 = arith.constant 134 : index
    %c1 = arith.constant 1 : index
    %6 = vector.load %arg1[%c134_6, %c1] : memref<144x256xf32, #tpu.memory_space<vmem>>, vector<6x1xf32>
    %c140 = arith.constant 140 : index
    %c0_7 = arith.constant 0 : index
    %7 = vector.load %arg1[%c140, %c0_7] : memref<144x256xf32, #tpu.memory_space<vmem>>, vector<1x64xf32>
    %c141 = arith.constant 141 : index
    %c0_8 = arith.constant 0 : index
    %8 = vector.load %arg1[%c141, %c0_8] : memref<144x256xf32, #tpu.memory_space<vmem>>, vector<1x256xf32>
    %cst = arith.constant dense<0.000000e+00> : vector<2x256xf32>
    %9 = tpu.matmul %0, %1, %cst {dimension_numbers = #tpu.dot_dimension_numbers<[1], [0], [0], [1], [0, 0, 1, 1], [], []>} : vector<2x64xf32>, vector<64x256xf32>, vector<2x256xf32> -> vector<2x256xf32>
    %10 = vector.broadcast %2 : vector<1x256xf32> to vector<2x256xf32>
    %11 = arith.addf %9, %10 : vector<2x256xf32>
    %12 = vector.extract_strided_slice %11 {offsets = [0, 0], sizes = [2, 32], strides = [1, 1]} : vector<2x256xf32> to vector<2x32xf32>
    %13 = vector.extract_strided_slice %11 {offsets = [0, 128], sizes = [2, 32], strides = [1, 1]} : vector<2x256xf32> to vector<2x32xf32>
    %14 = tpu.concatenate %12, %12, %12, %12, %12, %12, %12, %12, %12, %12, %12, %12 in 1 : vector<2x32xf32>, vector<2x32xf32>, vector<2x32xf32>, vector<2x32xf32>, vector<2x32xf32>, vector<2x32xf32>, vector<2x32xf32>, vector<2x32xf32>, vector<2x32xf32>, vector<2x32xf32>, vector<2x32xf32>, vector<2x32xf32> -> vector<2x384xf32>
    %c0_9 = arith.constant 0 : index
    %c0_10 = arith.constant 0 : index
    %15 = vector.load %arg2[%c0_9, %c0_10] : memref<32x384xf32, #tpu.memory_space<vmem>>, vector<32x384xf32>
    %16 = vector.shape_cast %15 : vector<32x384xf32> to vector<1x32x384xf32>
    %17 = vector.shape_cast %14 : vector<2x384xf32> to vector<2x1x384xf32>
    %18 = vector.broadcast %16 : vector<1x32x384xf32> to vector<2x32x384xf32>
    %19 = vector.broadcast %17 : vector<2x1x384xf32> to vector<2x32x384xf32>
    %20 = arith.mulf %18, %19 : vector<2x32x384xf32>
    %21 = vector.shape_cast %20 : vector<2x32x384xf32> to vector<64x384xf32>
    %22 = arith.mulf %21, %21 : vector<64x384xf32>
    %cst_11 = arith.constant dense<0.000000e+00> : vector<64xf32>
    %23 = vector.multi_reduction <add>, %22, %cst_11 [1] : vector<64x384xf32> to vector<64xf32>
    %24 = vector.shape_cast %23 : vector<64xf32> to vector<64x1xf32>
    %cst_12 = arith.constant 9.99999993E-9 : f32
    %25 = vector.broadcast %cst_12 : f32 to vector<64x1xf32>
    %26 = arith.addf %24, %25 : vector<64x1xf32>
    %27 = math.rsqrt %26 : vector<64x1xf32>
    %c0_13 = arith.constant 0 : index
    %c0_14 = arith.constant 0 : index
    %28 = vector.load %arg3[%c0_13, %c0_14] : memref<384x256xf32, #tpu.memory_space<vmem>>, vector<384x256xf32>
    %cst_15 = arith.constant dense<0.000000e+00> : vector<64x256xf32>
    %29 = tpu.matmul %21, %28, %cst_15 {dimension_numbers = #tpu.dot_dimension_numbers<[1], [0], [0], [1], [0, 0, 1, 1], [], []>} : vector<64x384xf32>, vector<384x256xf32>, vector<64x256xf32> -> vector<64x256xf32>
    %30 = vector.broadcast %27 : vector<64x1xf32> to vector<64x256xf32>
    %31 = arith.mulf %29, %30 : vector<64x256xf32>
    %32 = vector.broadcast %8 : vector<1x256xf32> to vector<64x256xf32>
    %33 = arith.addf %31, %32 : vector<64x256xf32>
    %34 = vector.broadcast %4 : vector<64x1xf32> to vector<64x256xf32>
    %35 = arith.addf %33, %34 : vector<64x256xf32>
    %cst_16 = arith.constant 0.000000e+00 : f32
    %36 = vector.broadcast %cst_16 : f32 to vector<64x256xf32>
    %37 = arith.cmpf oge, %35, %36 : vector<64x256xf32>
    %cst_17 = arith.constant 2.000000e-01 : f32
    %38 = vector.broadcast %cst_17 : f32 to vector<64x256xf32>
    %39 = arith.mulf %38, %35 : vector<64x256xf32>
    %40 = arith.select %37, %35, %39 : vector<64x256xi1>, vector<64x256xf32>
    %cst_18 = arith.constant 1.41421354 : f32
    %41 = vector.broadcast %cst_18 : f32 to vector<64x256xf32>
    %42 = arith.mulf %40, %41 : vector<64x256xf32>
    %c0_19 = arith.constant 0 : index
    %c0_20 = arith.constant 0 : index
    %43 = vector.load %arg4[%c0_19, %c0_20] : memref<64x256xf32, #tpu.memory_space<vmem>>, vector<64x256xf32>
    tpu.vector_store %arg4[%c0_19, %c0_20], %42 {strides = array<i32>} : memref<64x256xf32, #tpu.memory_space<vmem>>, vector<64x256xf32>,
    %44 = vector.shape_cast %3 : vector<3x32xf32> to vector<1x3x32xf32>
    %45 = vector.shape_cast %13 : vector<2x32xf32> to vector<2x1x32xf32>
    %46 = vector.broadcast %44 : vector<1x3x32xf32> to vector<2x3x32xf32>
    %47 = vector.broadcast %45 : vector<2x1x32xf32> to vector<2x3x32xf32>
    %48 = arith.mulf %46, %47 : vector<2x3x32xf32>
    %49 = vector.shape_cast %48 : vector<2x3x32xf32> to vector<6x32xf32>
    %50 = tpu.concatenate %49, %49 in 1 : vector<6x32xf32>, vector<6x32xf32> -> vector<6x64xf32>
    %51 = vector.broadcast %6 : vector<6x1xf32> to vector<6x64xf32>
    %52 = vector.broadcast %7 : vector<1x64xf32> to vector<6x64xf32>
    %53 = arith.cmpf oeq, %51, %52 : vector<6x64xf32>
    %cst_21 = arith.constant 0.000000e+00 : f32
    %54 = vector.broadcast %cst_21 : f32 to vector<6x64xf32>
    %55 = arith.select %53, %50, %54 : vector<6x64xi1>, vector<6x64xf32>
    %cst_22 = arith.constant dense<0.000000e+00> : vector<6x256xf32>
    %56 = tpu.matmul %55, %42, %cst_22 {dimension_numbers = #tpu.dot_dimension_numbers<[1], [0], [0], [1], [0, 0, 1, 1], [], []>} : vector<6x64xf32>, vector<64x256xf32>, vector<6x256xf32> -> vector<6x256xf32>
    %57 = vector.broadcast %5 : vector<6x1xf32> to vector<6x256xf32>
    %58 = arith.addf %56, %57 : vector<6x256xf32>
    %c0_23 = arith.constant 0 : index
    %c0_24 = arith.constant 0 : index
    %59 = vector.load %arg5[%c0_23, %c0_24] : memref<6x256xf32, #tpu.memory_space<vmem>>, vector<6x256xf32>
    tpu.vector_store %arg5[%c0_23, %c0_24], %58 {strides = array<i32>} : memref<6x256xf32, #tpu.memory_space<vmem>>, vector<6x256xf32>,
    return
  }
  func.func @transform_0(%arg0: i32) -> (i32, i32) {
    %c0_i32 = arith.constant 0 : i32
    %c0_i32_0 = arith.constant 0 : i32
    %c0_i32_1 = arith.constant 0 : i32
    return %c0_i32, %c0_i32_0 : i32, i32
  }
  func.func @transform_1(%arg0: i32) -> (i32, i32) {
    %c0_i32 = arith.constant 0 : i32
    %c0_i32_0 = arith.constant 0 : i32
    %c0_i32_1 = arith.constant 0 : i32
    return %c0_i32, %c0_i32_0 : i32, i32
  }
  func.func @transform_2(%arg0: i32) -> (i32, i32) {
    %c0_i32 = arith.constant 0 : i32
    %c0_i32_0 = arith.constant 0 : i32
    %c0_i32_1 = arith.constant 0 : i32
    return %c0_i32, %c0_i32_0 : i32, i32
  }
  func.func @transform_3(%arg0: i32) -> (i32, i32) {
    %c0_i32 = arith.constant 0 : i32
    %c0_i32_0 = arith.constant 0 : i32
    %c0_i32_1 = arith.constant 0 : i32
    return %c0_i32, %c0_i32_0 : i32, i32
  }
  func.func @transform_4(%arg0: i32) -> (i32, i32) {
    %c0_i32 = arith.constant 0 : i32
    %c0_i32_0 = arith.constant 0 : i32
    %c0_i32_1 = arith.constant 0 : i32
    return %c0_i32, %c0_i32_0 : i32, i32
  }
}

</mosaic_0001>

<llo_original>
// kernel: tpu_custom_call.1
$region0: #{tpu_custom_call.1}
  #allocation0 [shape = 'u32[]', space=smem, size = 0x4, offset = 0x4, fixed_abs, tag = 'smem constant byte address 0x4 - core index']
  #allocation1 [shape = 'u32[72,128]{1,0:T(1,128)}', space=vmem, size = 0x9000, scoped, tag = 'internal scratch']
  %s0 = inlined_call_operand.hbm [shape: f32[144,256], index: 0, kind: input, shape index: {}]
  %s1 = inlined_call_operand.hbm [shape: f32[32,384], index: 1, kind: input, shape index: {}]
  %s2 = inlined_call_operand.hbm [shape: f32[384,256], index: 2, kind: input, shape index: {}]
  %s3 = inlined_call_operand.hbm [shape: f32[64,256], index: 3, kind: output, shape index: {0}]
  %s4 = inlined_call_operand.hbm [shape: f32[6,256], index: 4, kind: output, shape index: {1}]
  %5 = xla_tuple %s3, %s4
  %s6 = sld [smem:[#allocation0]]
  $region42: #{tpu_custom_call.1} parent=0
    _
  %s8 = ssub.s32 1, %s6
  %s9 = scalar_select 0, %s8, %s6
  $region1: #{tpu_custom_call.1} parent=0
    #allocation2 [shape = 'u8[147456]{0}', space=vmem, size = 0x24000, scoped, tag = 'input window, operand 0, single buffered']
    #allocation3 [shape = 's32[1]{0}', space=sflag, size = 0x4, scoped, tag = 'scoped memory for tpu_custom_call.1']
    #allocation4 [shape = 's32[1]{0}', space=sflag, size = 0x4, scoped, tag = 'scoped memory for tpu_custom_call.1']
    #allocation5 [shape = 'u8[49152]{0}', space=vmem, size = 0xc000, scoped, tag = 'input window, operand 1, single buffered']
    #allocation6 [shape = 's32[1]{0}', space=sflag, size = 0x4, scoped, tag = 'scoped memory for tpu_custom_call.1']
    #allocation7 [shape = 'u8[393216]{0}', space=vmem, size = 0x60000, scoped, tag = 'input window, operand 2, single buffered']
    #allocation8 [shape = 'u8[65536]{0}', space=vmem, size = 0x10000, scoped, tag = 'output window, operand 0, single buffered']
    #allocation9 [shape = 'u8[8192]{0}', space=vmem, size = 0x2000, scoped, tag = 'output window, operand 1, single buffered']
    #allocation10 [shape = 's32[1]{0}', space=sflag, size = 0x4, scoped, tag = 'scoped memory for tpu_custom_call.1']
    %10 = vsyncpa [#allocation3], 0
    %11 = vsyncpa [#allocation6], 0
    %12 = vsyncpa [#allocation4], 0
    %13 = vsyncpa [#allocation10], 0
    // Predicated region
    $region2: #{tpu_custom_call.1} parent=1 // pred_check
      _
    $region3: #{tpu_custom_call.1} parent=1 // pred_check_branch
      %15 = sbr.rel (0) target = $region5
    $region4: #{tpu_custom_call.1} parent=1 // pred_region
      %17 = vsyncadd [#allocation3], 0
      %s18 = sshll.u32 %s0, 4
      %s19 = int_to_ptr.hbm [resolvable:$true] %s18
      %s20 = sshll.u32 [#allocation2], 4
      %s21 = int_to_ptr.vmem [resolvable:$true] %s20
      %26 = dma.hbm_to_vmem [thread:$0]  %s19, 4608, %s21, [#allocation3], 256, 256, 16
    $region5: #{tpu_custom_call.1} parent=1 // pred_fallthru
      _
    // Predicated region
    $region6: #{tpu_custom_call.1} parent=1 // pred_check
      _
    $region7: #{tpu_custom_call.1} parent=1 // pred_check_branch
      %28 = sbr.rel (0) target = $region9
    $region8: #{tpu_custom_call.1} parent=1 // pred_region
      %30 = vsyncadd [#allocation6], 0
      %s31 = sshll.u32 %s1, 4
      %s32 = int_to_ptr.hbm [resolvable:$true] %s31
      %s33 = sshll.u32 [#allocation5], 4
      %s34 = int_to_ptr.vmem [resolvable:$true] %s33
      %39 = dma.hbm_to_vmem [thread:$0]  %s32, 1536, %s34, [#allocation6], 384, 384, 24
    $region9: #{tpu_custom_call.1} parent=1 // pred_fallthru
      _
    // Predicated region
    $region10: #{tpu_custom_call.1} parent=1 // pred_check
      _
    $region11: #{tpu_custom_call.1} parent=1 // pred_check_branch
      %41 = sbr.rel (0) target = $region13
    $region12: #{tpu_custom_call.1} parent=1 // pred_region
      %43 = vsyncadd [#allocation6], 0
      %s44 = sshll.u32 %s2, 4
      %s45 = int_to_ptr.hbm [resolvable:$true] %s44
      %s46 = sshll.u32 [#allocation7], 4
      %s47 = int_to_ptr.vmem [resolvable:$true] %s46
      %52 = dma.hbm_to_vmem [thread:$0]  %s45, 12288, %s47, [#allocation6], 256, 256, 16
    $region13: #{tpu_custom_call.1} parent=1 // pred_fallthru
      _
    // Predicated region
    $region14: #{tpu_custom_call.1} parent=1 // pred_check
      _
    $region15: #{tpu_custom_call.1} parent=1 // pred_check_branch
      %54 = sbr.rel (0) target = $region17
    $region16: #{tpu_custom_call.1} parent=1 // pred_region
      %56 = dma.done [#allocation3], 4608
    $region17: #{tpu_custom_call.1} parent=1 // pred_fallthru
      _
    // Predicated region
    $region18: #{tpu_custom_call.1} parent=1 // pred_check
      _
    $region19: #{tpu_custom_call.1} parent=1 // pred_check_branch
      %58 = sbr.rel (0) target = $region21
    $region20: #{tpu_custom_call.1} parent=1 // pred_region
      %60 = dma.done [#allocation6], 1536
    $region21: #{tpu_custom_call.1} parent=1 // pred_fallthru
      _
    // Predicated region
    $region22: #{tpu_custom_call.1} parent=1 // pred_check
      _
    $region23: #{tpu_custom_call.1} parent=1 // pred_check_branch
      %62 = sbr.rel (0) target = $region25
    $region24: #{tpu_custom_call.1} parent=1 // pred_region
      %64 = dma.done [#allocation6], 12288
    $region25: #{tpu_custom_call.1} parent=1 // pred_fallthru
      _
    %v65 = vld [vmem:[#allocation2] sm:$0x3]
    %v66 = vld [vmem:[#allocation2] sm:$0xfc]
    %v67 = vld [vmem:[#allocation2 + $0x8] sm:$0xfc]
    %v68 = vld [vmem:[#allocation2 + $0x10] sm:$0xff]
    %v69 = vld [vmem:[#allocation2 + $0x18] sm:$0xff]
    %v70 = vld [vmem:[#allocation2 + $0x20] sm:$0xff]
    %v71 = vld [vmem:[#allocation2 + $0x28] sm:$0xff]
    %v72 = vld [vmem:[#allocation2 + $0x30] sm:$0xff]
    %v73 = vld [vmem:[#allocation2 + $0x38] sm:$0xff]
    %v74 = vld [vmem:[#allocation2 + $0x40] sm:$0xff]
    %v75 = vld [vmem:[#allocation2 + $0x48] sm:$0xff]
    %v76 = vld [vmem:[#allocation2 + $0x50] sm:$0xff]
    %v77 = vld [vmem:[#allocation2 + $0x58] sm:$0xff]
    %v78 = vld [vmem:[#allocation2 + $0x60] sm:$0xff]
    %v79 = vld [vmem:[#allocation2 + $0x68] sm:$0xff]
    %v80 = vld [vmem:[#allocation2 + $0x70] sm:$0xff]
    %v81 = vld [vmem:[#allocation2 + $0x78] sm:$0xff]
    %v82 = vld [vmem:[#allocation2 + $0x80] sm:$0x3]
    %v83 = vld [vmem:[#allocation2 + $0x88] sm:$0x3]
    %s84 = scalar_lea.vmem [#allocation2], 130
    %v85 = vld [vmem:[%s84] ss:$8 sm:$0x3]
    %v86 = vld [vmem:[#allocation2 + $0x80] sm:$0x38]
    %v87 = vld [vmem:[#allocation2 + $0x80] sm:$0xc0]
    %v88 = vld [vmem:[#allocation2 + $0x90] sm:$0xff]
    %v89 = vld [vmem:[#allocation2 + $0xa0] sm:$0xff]
    %v90 = vld [vmem:[#allocation2 + $0xb0] sm:$0xff]
    %v91 = vld [vmem:[#allocation2 + $0xc0] sm:$0xff]
    %v92 = vld [vmem:[#allocation2 + $0xd0] sm:$0xff]
    %v93 = vld [vmem:[#allocation2 + $0xe0] sm:$0xff]
    %v94 = vld [vmem:[#allocation2 + $0xf0] sm:$0xff]
    %v95 = vld [vmem:[#allocation2 + $0x100] sm:$0x3f]
    %v96 = vld [vmem:[#allocation2 + $0x100] sm:$0xc0]
    %v97 = vld [vmem:[#allocation2 + $0x110] sm:$0xf]
    %v98 = vld [vmem:[#allocation2 + $0x114] ss:$0 sm:$0xff]
    %s99 = scalar_lea.vmem [#allocation2], 277
    %v100 = vld [vmem:[%s99] ss:$8 sm:$0x3]
    %v102 = vperm.slane %v85, 0
    %v103 = vperm.slane %v85, 1
    %vm124 = vcmask 1045504
    %v125 = vrot.slane %v66, 2
    %v126 = vrot.slane %v68, 2
    %v127 = vsel %vm124, %v125, %v126
    %v128 = vrot.slane %v67, 2
    %v129 = vrot.slane %v69, 2
    %v130 = vsel %vm124, %v128, %v129
    %v131 = vrot.slane %v70, 2
    %v132 = vsel %vm124, %v126, %v131
    %v133 = vrot.slane %v71, 2
    %v134 = vsel %vm124, %v129, %v133
    %v135 = vrot.slane %v72, 2
    %v136 = vsel %vm124, %v131, %v135
    %v137 = vrot.slane %v73, 2
    %v138 = vsel %vm124, %v133, %v137
    %v139 = vrot.slane %v74, 2
    %v140 = vsel %vm124, %v135, %v139
    %v141 = vrot.slane %v75, 2
    %v142 = vsel %vm124, %v137, %v141
    %v143 = vrot.slane %v76, 2
    %v144 = vsel %vm124, %v139, %v143
    %v145 = vrot.slane %v77, 2
    %v146 = vsel %vm124, %v141, %v145
    %v147 = vrot.slane %v78, 2
    %v148 = vsel %vm124, %v143, %v147
    %v149 = vrot.slane %v79, 2
    %v150 = vsel %vm124, %v145, %v149
    %v151 = vrot.slane %v80, 2
    %v152 = vsel %vm124, %v147, %v151
    %v153 = vrot.slane %v81, 2
    %v154 = vsel %vm124, %v149, %v153
    %v155 = vrot.slane %v82, 2
    %v156 = vsel %vm124, %v151, %v155
    %v157 = vrot.slane %v83, 2
    %v158 = vsel %vm124, %v153, %v157
    %vm175 = vcmask 523264
    %v177 = vsel %vm175, %v65, 0
    %179 = vmatpush.msra.mxu0 0.0
    %180 = vmatpush.msra.mxu0 0.0
    %181 = vmatpush.msra.mxu0 0.0
    %182 = vmatpush.msra.mxu0 0.0
    %183 = vmatpush.msra.mxu0 0.0
    %184 = vmatpush.msra.mxu0 0.0
    %185 = vmatpush.msra.mxu0 0.0
    %186 = vmatpush.msra.mxu0 0.0
    %187 = vmatpush.msra.mxu0 %v156
    %188 = vmatpush.msra.mxu0 %v152
    %189 = vmatpush.msra.mxu0 %v148
    %190 = vmatpush.msra.mxu0 %v144
    %191 = vmatpush.msra.mxu0 %v140
    %192 = vmatpush.msra.mxu0 %v136
    %193 = vmatpush.msra.mxu0 %v132
    %194 = vmatpush.msra.mxu0 %v127
    %195 = vmatmul.f32.gmra.mxu0 %v177
    %v196 = vpop.f32.mrf.mxu0
    %v197 = vadd.f32 %v102, %v196
    %198 = vdwg.mxu0
    %199 = vmatpush.msra.mxu0 0.0
    %200 = vmatpush.msra.mxu0 0.0
    %201 = vmatpush.msra.mxu0 0.0
    %202 = vmatpush.msra.mxu0 0.0
    %203 = vmatpush.msra.mxu0 0.0
    %204 = vmatpush.msra.mxu0 0.0
    %205 = vmatpush.msra.mxu0 0.0
    %206 = vmatpush.msra.mxu0 0.0
    %207 = vmatpush.msra.mxu0 %v158
    %208 = vmatpush.msra.mxu0 %v154
    %209 = vmatpush.msra.mxu0 %v150
    %210 = vmatpush.msra.mxu0 %v146
    %211 = vmatpush.msra.mxu0 %v142
    %212 = vmatpush.msra.mxu0 %v138
    %213 = vmatpush.msra.mxu0 %v134
    %214 = vmatpush.msra.mxu0 %v130
    %215 = vmatmul.f32.gmra.mxu0 %v177
    %v216 = vpop.f32.mrf.mxu0
    %v217 = vadd.f32 %v103, %v216
    %218 = vdwg.mxu0
    %220 = vrot.lane.b32.xlu0 %v197, 32
    %v221 = vpop.permute.xlu0 %220
    %223 = vrot.lane.b32.xlu0 %v197, 64
    %v224 = vpop.permute.xlu0 %223
    %226 = vrot.lane.b32.xlu0 %v197, 96
    %v227 = vpop.permute.xlu0 %226
    %vm229 = vcmask 261120
    %v230 = vsel %vm229, %v197, %v221
    %v231 = vsel %vm175, %v230, %v224
    %vm232 = vcmask 785408
    %v233 = vsel %vm232, %v231, %v227
    %v234 = vld [vmem:[#allocation5] sm:$0xff]
    %v235 = vld [vmem:[#allocation5 + $0x8] sm:$0xff]
    %v236 = vld [vmem:[#allocation5 + $0x10] sm:$0xff]
    %v237 = vld [vmem:[#allocation5 + $0x18] sm:$0xff]
    %v238 = vld [vmem:[#allocation5 + $0x20] sm:$0xff]
    %v239 = vld [vmem:[#allocation5 + $0x28] sm:$0xff]
    %v240 = vld [vmem:[#allocation5 + $0x30] sm:$0xff]
    %v241 = vld [vmem:[#allocation5 + $0x38] sm:$0xff]
    %v242 = vld [vmem:[#allocation5 + $0x40] sm:$0xff]
    %v243 = vld [vmem:[#allocation5 + $0x48] sm:$0xff]
    %v244 = vld [vmem:[#allocation5 + $0x50] sm:$0xff]
    %v245 = vld [vmem:[#allocation5 + $0x58] sm:$0xff]
    %v247 = vrot.slane %v233, 7
    %v248 = vrot.slane %v233, 6
    %vm249 = vcmask 1040384
    %v250 = vsel %vm249, %v233, %v247
    %vm251 = vcmask 1041408
    %v252 = vsel %vm251, %v250, %v248
    %vm253 = vcmask 1041409
    %v254 = vsel %vm253, %v233, %v247
    %vm255 = vcmask 1042433
    %v256 = vsel %vm255, %v254, %v248
    %v257 = vrot.slane %v256, 1
    %v258 = vperm.slane %v252, 0
    %v259 = vperm.slane %v252, 1
    %v260 = vperm.slane %v252, 2
    %v261 = vperm.slane %v257, 0
    %v262 = vperm.slane %v257, 1
    %v263 = vperm.slane %v257, 2
    %v270 = vmul.f32 %v234, %v258
    %v271 = vmul.f32 %v235, %v259
    %v272 = vmul.f32 %v236, %v260
    %v273 = vmul.f32 %v237, %v258
    %v274 = vmul.f32 %v238, %v259
    %v275 = vmul.f32 %v239, %v260
    %v276 = vmul.f32 %v240, %v258
    %v277 = vmul.f32 %v241, %v259
    %v278 = vmul.f32 %v242, %v260
    %v279 = vmul.f32 %v243, %v258
    %v280 = vmul.f32 %v244, %v259
    %v281 = vmul.f32 %v245, %v260
    %v282 = vmul.f32 %v234, %v261
    %v283 = vmul.f32 %v235, %v262
    %v284 = vmul.f32 %v236, %v263
    %v285 = vmul.f32 %v237, %v261
    %v286 = vmul.f32 %v238, %v262
    %v287 = vmul.f32 %v239, %v263
    %v288 = vmul.f32 %v240, %v261
    %v289 = vmul.f32 %v241, %v262
    %v290 = vmul.f32 %v242, %v263
    %v291 = vmul.f32 %v243, %v261
    %v292 = vmul.f32 %v244, %v262
    %v293 = vmul.f32 %v245, %v263
    %v294 = vmul.f32 %v270, %v270
    %v295 = vmul.f32 %v271, %v271
    %v296 = vmul.f32 %v272, %v272
    %v297 = vmul.f32 %v273, %v273
    %v298 = vmul.f32 %v274, %v274
    %v299 = vmul.f32 %v275, %v275
    %v300 = vmul.f32 %v276, %v276
    %v301 = vmul.f32 %v277, %v277
    %v302 = vmul.f32 %v278, %v278
    %v303 = vmul.f32 %v279, %v279
    %v304 = vmul.f32 %v280, %v280
    %v305 = vmul.f32 %v281, %v281
    %v306 = vmul.f32 %v282, %v282
    %v307 = vmul.f32 %v283, %v283
    %v308 = vmul.f32 %v284, %v284
    %v309 = vmul.f32 %v285, %v285
    %v310 = vmul.f32 %v286, %v286
    %v311 = vmul.f32 %v287, %v287
    %v312 = vmul.f32 %v288, %v288
    %v313 = vmul.f32 %v289, %v289
    %v314 = vmul.f32 %v290, %v290
    %v315 = vmul.f32 %v291, %v291
    %v316 = vmul.f32 %v292, %v292
    %v317 = vmul.f32 %v293, %v293
    %v318 = vadd.f32 %v294, %v295
    %v319 = vadd.f32 %v318, %v296
    %320 = vadd.xlane.f32.xlu0 %v319
    %v321 = vpop.xlane.xlu0 %320
    %v322 = vadd.f32 %v297, %v298
    %v323 = vadd.f32 %v322, %v299
    %324 = vadd.xlane.f32.xlu0 %v323
    %v325 = vpop.xlane.xlu0 %324
    %v326 = vadd.f32 %v300, %v301
    %v327 = vadd.f32 %v326, %v302
    %328 = vadd.xlane.f32.xlu0 %v327
    %v329 = vpop.xlane.xlu0 %328
    %v330 = vadd.f32 %v303, %v304
    %v331 = vadd.f32 %v330, %v305
    %332 = vadd.xlane.f32.xlu0 %v331
    %v333 = vpop.xlane.xlu0 %332
    %v334 = vadd.f32 %v306, %v307
    %v335 = vadd.f32 %v334, %v308
    %336 = vadd.xlane.f32.xlu0 %v335
    %v337 = vpop.xlane.xlu0 %336
    %v338 = vadd.f32 %v309, %v310
    %v339 = vadd.f32 %v338, %v311
    %340 = vadd.xlane.f32.xlu0 %v339
    %v341 = vpop.xlane.xlu0 %340
    %v342 = vadd.f32 %v312, %v313
    %v343 = vadd.f32 %v342, %v314
    %344 = vadd.xlane.f32.xlu0 %v343
    %v345 = vpop.xlane.xlu0 %344
    %v346 = vadd.f32 %v315, %v316
    %v347 = vadd.f32 %v346, %v317
    %348 = vadd.xlane.f32.xlu0 %v347
    %v349 = vpop.xlane.xlu0 %348
    %v350 = vadd.f32 %v321, 1e-08
    %v351 = vadd.f32 %v325, 1e-08
    %v352 = vadd.f32 %v329, 1e-08
    %v353 = vadd.f32 %v333, 1e-08
    %v354 = vadd.f32 %v337, 1e-08
    %v355 = vadd.f32 %v341, 1e-08
    %v356 = vadd.f32 %v345, 1e-08
    %v357 = vadd.f32 %v349, 1e-08
    %v358 = vrsqrt.pop %v350
    %v359 = vmul.f32 %v358, %v350
    %v360 = vmul.f32 %v359, %v358
    %v361 = vmul.f32 0.5, %v360
    %v362 = vsub.f32 1.5, %v361
    %v363 = vmul.f32 %v358, %v362
    %vm364 = vweird.f32 %v350
    %vm365 = vweird.f32 %v358
    %vm366 = vmor %vm364, %vm365
    %v367 = vsel %vm366, %v358, %v363
    %v368 = vrsqrt.pop %v351
    %v369 = vmul.f32 %v368, %v351
    %v370 = vmul.f32 %v369, %v368
    %v371 = vmul.f32 0.5, %v370
    %v372 = vsub.f32 1.5, %v371
    %v373 = vmul.f32 %v368, %v372
    %vm374 = vweird.f32 %v351
    %vm375 = vweird.f32 %v368
    %vm376 = vmor %vm374, %vm375
    %v377 = vsel %vm376, %v368, %v373
    %v378 = vrsqrt.pop %v352
    %v379 = vmul.f32 %v378, %v352
    %v380 = vmul.f32 %v379, %v378
    %v381 = vmul.f32 0.5, %v380
    %v382 = vsub.f32 1.5, %v381
    %v383 = vmul.f32 %v378, %v382
    %vm384 = vweird.f32 %v352
    %vm385 = vweird.f32 %v378
    %vm386 = vmor %vm384, %vm385
    %v387 = vsel %vm386, %v378, %v383
    %v388 = vrsqrt.pop %v353
    %v389 = vmul.f32 %v388, %v353
    %v390 = vmul.f32 %v389, %v388
    %v391 = vmul.f32 0.5, %v390
    %v392 = vsub.f32 1.5, %v391
    %v393 = vmul.f32 %v388, %v392
    %vm394 = vweird.f32 %v353
    %vm395 = vweird.f32 %v388
    %vm396 = vmor %vm394, %vm395
    %v397 = vsel %vm396, %v388, %v393
    %v398 = vrsqrt.pop %v354
    %v399 = vmul.f32 %v398, %v354
    %v400 = vmul.f32 %v399, %v398
    %v401 = vmul.f32 0.5, %v400
    %v402 = vsub.f32 1.5, %v401
    %v403 = vmul.f32 %v398, %v402
    %vm404 = vweird.f32 %v354
    %vm405 = vweird.f32 %v398
    %vm406 = vmor %vm404, %vm405
    %v407 = vsel %vm406, %v398, %v403
    %v408 = vrsqrt.pop %v355
    %v409 = vmul.f32 %v408, %v355
    %v410 = vmul.f32 %v409, %v408
    %v411 = vmul.f32 0.5, %v410
    %v412 = vsub.f32 1.5, %v411
    %v413 = vmul.f32 %v408, %v412
    %vm414 = vweird.f32 %v355
    %vm415 = vweird.f32 %v408
    %vm416 = vmor %vm414, %vm415
    %v417 = vsel %vm416, %v408, %v413
    %v418 = vrsqrt.pop %v356
    %v419 = vmul.f32 %v418, %v356
    %v420 = vmul.f32 %v419, %v418
    %v421 = vmul.f32 0.5, %v420
    %v422 = vsub.f32 1.5, %v421
    %v423 = vmul.f32 %v418, %v422
    %vm424 = vweird.f32 %v356
    %vm425 = vweird.f32 %v418
    %vm426 = vmor %vm424, %vm425
    %v427 = vsel %vm426, %v418, %v423
    %v428 = vrsqrt.pop %v357
    %v429 = vmul.f32 %v428, %v357
    %v430 = vmul.f32 %v429, %v428
    %v431 = vmul.f32 0.5, %v430
    %v432 = vsub.f32 1.5, %v431
    %v433 = vmul.f32 %v428, %v432
    %vm434 = vweird.f32 %v357
    %vm435 = vweird.f32 %v428
    %vm436 = vmor %vm434, %vm435
    %v437 = vsel %vm436, %v428, %v433
    %v438 = vld [vmem:[#allocation7] sm:$0xff]
    %v439 = vld [vmem:[#allocation7 + $0x8] sm:$0xff]
    %v440 = vld [vmem:[#allocation7 + $0x10] sm:$0xff]
    %v441 = vld [vmem:[#allocation7 + $0x18] sm:$0xff]
    %v442 = vld [vmem:[#allocation7 + $0x20] sm:$0xff]
    %v443 = vld [vmem:[#allocation7 + $0x28] sm:$0xff]
    %v444 = vld [vmem:[#allocation7 + $0x30] sm:$0xff]
    %v445 = vld [vmem:[#allocation7 + $0x38] sm:$0xff]
    %v446 = vld [vmem:[#allocation7 + $0x40] sm:$0xff]
    %v447 = vld [vmem:[#allocation7 + $0x48] sm:$0xff]
    %v448 = vld [vmem:[#allocation7 + $0x50] sm:$0xff]
    %v449 = vld [vmem:[#allocation7 + $0x58] sm:$0xff]
    %v450 = vld [vmem:[#allocation7 + $0x60] sm:$0xff]
    %v451 = vld [vmem:[#allocation7 + $0x68] sm:$0xff]
    %v452 = vld [vmem:[#allocation7 + $0x70] sm:$0xff]
    %v453 = vld [vmem:[#allocation7 + $0x78] sm:$0xff]
    %v454 = vld [vmem:[#allocation7 + $0x80] sm:$0xff]
    %v455 = vld [vmem:[#allocation7 + $0x88] sm:$0xff]
    %v456 = vld [vmem:[#allocation7 + $0x90] sm:$0xff]
    %v457 = vld [vmem:[#allocation7 + $0x98] sm:$0xff]
    %v458 = vld [vmem:[#allocation7 + $0xa0] sm:$0xff]
    %v459 = vld [vmem:[#allocation7 + $0xa8] sm:$0xff]
    %v460 = vld [vmem:[#allocation7 + $0xb0] sm:$0xff]
    %v461 = vld [vmem:[#allocation7 + $0xb8] sm:$0xff]
    %v462 = vld [vmem:[#allocation7 + $0xc0] sm:$0xff]
    %v463 = vld [vmem:[#allocation7 + $0xc8] sm:$0xff]
    %v464 = vld [vmem:[#allocation7 + $0xd0] sm:$0xff]
    %v465 = vld [vmem:[#allocation7 + $0xd8] sm:$0xff]
    %v466 = vld [vmem:[#allocation7 + $0xe0] sm:$0xff]
    %v467 = vld [vmem:[#allocation7 + $0xe8] sm:$0xff]
    %v468 = vld [vmem:[#allocation7 + $0xf0] sm:$0xff]
    %v469 = vld [vmem:[#allocation7 + $0xf8] sm:$0xff]
    %v470 = vld [vmem:[#allocation7 + $0x100] sm:$0xff]
    %v471 = vld [vmem:[#allocation7 + $0x108] sm:$0xff]
    %v472 = vld [vmem:[#allocation7 + $0x110] sm:$0xff]
    %v473 = vld [vmem:[#allocation7 + $0x118] sm:$0xff]
    %v474 = vld [vmem:[#allocation7 + $0x120] sm:$0xff]
    %v475 = vld [vmem:[#allocation7 + $0x128] sm:$0xff]
    %v476 = vld [vmem:[#allocation7 + $0x130] sm:$0xff]
    %v477 = vld [vmem:[#allocation7 + $0x138] sm:$0xff]
    %v478 = vld [vmem:[#allocation7 + $0x140] sm:$0xff]
    %v479 = vld [vmem:[#allocation7 + $0x148] sm:$0xff]
    %v480 = vld [vmem:[#allocation7 + $0x150] sm:$0xff]
    %v481 = vld [vmem:[#allocation7 + $0x158] sm:$0xff]
    %v482 = vld [vmem:[#allocation7 + $0x160] sm:$0xff]
    %v483 = vld [vmem:[#allocation7 + $0x168] sm:$0xff]
    %v484 = vld [vmem:[#allocation7 + $0x170] sm:$0xff]
    %v485 = vld [vmem:[#allocation7 + $0x178] sm:$0xff]
    %v486 = vld [vmem:[#allocation7 + $0x180] sm:$0xff]
    %v487 = vld [vmem:[#allocation7 + $0x188] sm:$0xff]
    %v488 = vld [vmem:[#allocation7 + $0x190] sm:$0xff]
    %v489 = vld [vmem:[#allocation7 + $0x198] sm:$0xff]
    %v490 = vld [vmem:[#allocation7 + $0x1a0] sm:$0xff]
    %v491 = vld [vmem:[#allocation7 + $0x1a8] sm:$0xff]
    %v492 = vld [vmem:[#allocation7 + $0x1b0] sm:$0xff]
    %v493 = vld [vmem:[#allocation7 + $0x1b8] sm:$0xff]
    %v494 = vld [vmem:[#allocation7 + $0x1c0] sm:$0xff]
    %v495 = vld [vmem:[#allocation7 + $0x1c8] sm:$0xff]
    %v496 = vld [vmem:[#allocation7 + $0x1d0] sm:$0xff]
    %v497 = vld [vmem:[#allocation7 + $0x1d8] sm:$0xff]
    %v498 = vld [vmem:[#allocation7 + $0x1e0] sm:$0xff]
    %v499 = vld [vmem:[#allocation7 + $0x1e8] sm:$0xff]
    %v500 = vld [vmem:[#allocation7 + $0x1f0] sm:$0xff]
    %v501 = vld [vmem:[#allocation7 + $0x1f8] sm:$0xff]
    %v502 = vld [vmem:[#allocation7 + $0x200] sm:$0xff]
    %v503 = vld [vmem:[#allocation7 + $0x208] sm:$0xff]
    %v504 = vld [vmem:[#allocation7 + $0x210] sm:$0xff]
    %v505 = vld [vmem:[#allocation7 + $0x218] sm:$0xff]
    %v506 = vld [vmem:[#allocation7 + $0x220] sm:$0xff]
    %v507 = vld [vmem:[#allocation7 + $0x228] sm:$0xff]
    %v508 = vld [vmem:[#allocation7 + $0x230] sm:$0xff]
    %v509 = vld [vmem:[#allocation7 + $0x238] sm:$0xff]
    %v510 = vld [vmem:[#allocation7 + $0x240] sm:$0xff]
    %v511 = vld [vmem:[#allocation7 + $0x248] sm:$0xff]
    %v512 = vld [vmem:[#allocation7 + $0x250] sm:$0xff]
    %v513 = vld [vmem:[#allocation7 + $0x258] sm:$0xff]
    %v514 = vld [vmem:[#allocation7 + $0x260] sm:$0xff]
    %v515 = vld [vmem:[#allocation7 + $0x268] sm:$0xff]
    %v516 = vld [vmem:[#allocation7 + $0x270] sm:$0xff]
    %v517 = vld [vmem:[#allocation7 + $0x278] sm:$0xff]
    %v518 = vld [vmem:[#allocation7 + $0x280] sm:$0xff]
    %v519 = vld [vmem:[#allocation7 + $0x288] sm:$0xff]
    %v520 = vld [vmem:[#allocation7 + $0x290] sm:$0xff]
    %v521 = vld [vmem:[#allocation7 + $0x298] sm:$0xff]
    %v522 = vld [vmem:[#allocation7 + $0x2a0] sm:$0xff]
    %v523 = vld [vmem:[#allocation7 + $0x2a8] sm:$0xff]
    %v524 = vld [vmem:[#allocation7 + $0x2b0] sm:$0xff]
    %v525 = vld [vmem:[#allocation7 + $0x2b8] sm:$0xff]
    %v526 = vld [vmem:[#allocation7 + $0x2c0] sm:$0xff]
    %v527 = vld [vmem:[#allocation7 + $0x2c8] sm:$0xff]
    %v528 = vld [vmem:[#allocation7 + $0x2d0] sm:$0xff]
    %v529 = vld [vmem:[#allocation7 + $0x2d8] sm:$0xff]
    %v530 = vld [vmem:[#allocation7 + $0x2e0] sm:$0xff]
    %v531 = vld [vmem:[#allocation7 + $0x2e8] sm:$0xff]
    %v532 = vld [vmem:[#allocation7 + $0x2f0] sm:$0xff]
    %v533 = vld [vmem:[#allocation7 + $0x2f8] sm:$0xff]
    %534 = vmatpush.msra.mxu0 %v468
    %535 = vmatpush.msra.mxu0 %v466
    %536 = vmatpush.msra.mxu0 %v464
    %537 = vmatpush.msra.mxu0 %v462
    %538 = vmatpush.msra.mxu0 %v460
    %539 = vmatpush.msra.mxu0 %v458
    %540 = vmatpush.msra.mxu0 %v456
    %541 = vmatpush.msra.mxu0 %v454
    %542 = vmatpush.msra.mxu0 %v452
    %543 = vmatpush.msra.mxu0 %v450
    %544 = vmatpush.msra.mxu0 %v448
    %545 = vmatpush.msra.mxu0 %v446
    %546 = vmatpush.msra.mxu0 %v444
    %547 = vmatpush.msra.mxu0 %v442
    %548 = vmatpush.msra.mxu0 %v440
    %549 = vmatpush.msra.mxu0 %v438
    %550 = vmatmul.f32.gmra.mxu0 %v270
    %v551 = vpop.f32.mrf.mxu0
    %v552 = vadd.f32 0.0, %v551
    %553 = vmatmul.f32.gmra.mxu0 %v273
    %v554 = vpop.f32.mrf.mxu0
    %v555 = vadd.f32 0.0, %v554
    %556 = vmatmul.f32.gmra.mxu0 %v276
    %v557 = vpop.f32.mrf.mxu0
    %v558 = vadd.f32 0.0, %v557
    %559 = vmatmul.f32.gmra.mxu0 %v279
    %v560 = vpop.f32.mrf.mxu0
    %v561 = vadd.f32 0.0, %v560
    %562 = vmatmul.f32.gmra.mxu0 %v282
    %v563 = vpop.f32.mrf.mxu0
    %v564 = vadd.f32 0.0, %v563
    %565 = vmatmul.f32.gmra.mxu0 %v285
    %v566 = vpop.f32.mrf.mxu0
    %v567 = vadd.f32 0.0, %v566
    %568 = vmatmul.f32.gmra.mxu0 %v288
    %v569 = vpop.f32.mrf.mxu0
    %v570 = vadd.f32 0.0, %v569
    %571 = vmatmul.f32.gmra.mxu0 %v291
    %v572 = vpop.f32.mrf.mxu0
    %v573 = vadd.f32 0.0, %v572
    %574 = vdwg.mxu0
    %575 = vmatpush.msra.mxu0 %v500
    %576 = vmatpush.msra.mxu0 %v498
    %577 = vmatpush.msra.mxu0 %v496
    %578 = vmatpush.msra.mxu0 %v494
    %579 = vmatpush.msra.mxu0 %v492
    %580 = vmatpush.msra.mxu0 %v490
    %581 = vmatpush.msra.mxu0 %v488
    %582 = vmatpush.msra.mxu0 %v486
    %583 = vmatpush.msra.mxu0 %v484
    %584 = vmatpush.msra.mxu0 %v482
    %585 = vmatpush.msra.mxu0 %v480
    %586 = vmatpush.msra.mxu0 %v478
    %587 = vmatpush.msra.mxu0 %v476
    %588 = vmatpush.msra.mxu0 %v474
    %589 = vmatpush.msra.mxu0 %v472
    %590 = vmatpush.msra.mxu0 %v470
    %591 = vmatmul.f32.gmra.mxu0 %v271
    %v592 = vpop.f32.mrf.mxu0
    %v593 = vadd.f32 %v552, %v592
    %594 = vmatmul.f32.gmra.mxu0 %v274
    %v595 = vpop.f32.mrf.mxu0
    %v596 = vadd.f32 %v555, %v595
    %597 = vmatmul.f32.gmra.mxu0 %v277
    %v598 = vpop.f32.mrf.mxu0
    %v599 = vadd.f32 %v558, %v598
    %600 = vmatmul.f32.gmra.mxu0 %v280
    %v601 = vpop.f32.mrf.mxu0
    %v602 = vadd.f32 %v561, %v601
    %603 = vmatmul.f32.gmra.mxu0 %v283
    %v604 = vpop.f32.mrf.mxu0
    %v605 = vadd.f32 %v564, %v604
    %606 = vmatmul.f32.gmra.mxu0 %v286
    %v607 = vpop.f32.mrf.mxu0
    %v608 = vadd.f32 %v567, %v607
    %609 = vmatmul.f32.gmra.mxu0 %v289
    %v610 = vpop.f32.mrf.mxu0
    %v611 = vadd.f32 %v570, %v610
    %612 = vmatmul.f32.gmra.mxu0 %v292
    %v613 = vpop.f32.mrf.mxu0
    %v614 = vadd.f32 %v573, %v613
    %615 = vdwg.mxu0
    %616 = vmatpush.msra.mxu0 %v532
    %617 = vmatpush.msra.mxu0 %v530
    %618 = vmatpush.msra.mxu0 %v528
    %619 = vmatpush.msra.mxu0 %v526
    %620 = vmatpush.msra.mxu0 %v524
    %621 = vmatpush.msra.mxu0 %v522
    %622 = vmatpush.msra.mxu0 %v520
    %623 = vmatpush.msra.mxu0 %v518
    %624 = vmatpush.msra.mxu0 %v516
    %625 = vmatpush.msra.mxu0 %v514
    %626 = vmatpush.msra.mxu0 %v512
    %627 = vmatpush.msra.mxu0 %v510
    %628 = vmatpush.msra.mxu0 %v508
    %629 = vmatpush.msra.mxu0 %v506
    %630 = vmatpush.msra.mxu0 %v504
    %631 = vmatpush.msra.mxu0 %v502
    %632 = vmatmul.f32.gmra.mxu0 %v272
    %v633 = vpop.f32.mrf.mxu0
    %v634 = vadd.f32 %v593, %v633
    %635 = vmatmul.f32.gmra.mxu0 %v275
    %v636 = vpop.f32.mrf.mxu0
    %v637 = vadd.f32 %v596, %v636
    %638 = vmatmul.f32.gmra.mxu0 %v278
    %v639 = vpop.f32.mrf.mxu0
    %v640 = vadd.f32 %v599, %v639
    %641 = vmatmul.f32.gmra.mxu0 %v281
    %v642 = vpop.f32.mrf.mxu0
    %v643 = vadd.f32 %v602, %v642
    %644 = vmatmul.f32.gmra.mxu0 %v284
    %v645 = vpop.f32.mrf.mxu0
    %v646 = vadd.f32 %v605, %v645
    %647 = vmatmul.f32.gmra.mxu0 %v287
    %v648 = vpop.f32.mrf.mxu0
    %v649 = vadd.f32 %v608, %v648
    %650 = vmatmul.f32.gmra.mxu0 %v290
    %v651 = vpop.f32.mrf.mxu0
    %v652 = vadd.f32 %v611, %v651
    %653 = vmatmul.f32.gmra.mxu0 %v293
    %v654 = vpop.f32.mrf.mxu0
    %v655 = vadd.f32 %v614, %v654
    %656 = vdwg.mxu0
    %657 = vmatpush.msra.mxu0 %v469
    %658 = vmatpush.msra.mxu0 %v467
    %659 = vmatpush.msra.mxu0 %v465
    %660 = vmatpush.msra.mxu0 %v463
    %661 = vmatpush.msra.mxu0 %v461
    %662 = vmatpush.msra.mxu0 %v459
    %663 = vmatpush.msra.mxu0 %v457
    %664 = vmatpush.msra.mxu0 %v455
    %665 = vmatpush.msra.mxu0 %v453
    %666 = vmatpush.msra.mxu0 %v451
    %667 = vmatpush.msra.mxu0 %v449
    %668 = vmatpush.msra.mxu0 %v447
    %669 = vmatpush.msra.mxu0 %v445
    %670 = vmatpush.msra.mxu0 %v443
    %671 = vmatpush.msra.mxu0 %v441
    %672 = vmatpush.msra.mxu0 %v439
    %673 = vmatmul.f32.gmra.mxu0 %v270
    %v674 = vpop.f32.mrf.mxu0
    %v675 = vadd.f32 0.0, %v674
    %676 = vmatmul.f32.gmra.mxu0 %v273
    %v677 = vpop.f32.mrf.mxu0
    %v678 = vadd.f32 0.0, %v677
    %679 = vmatmul.f32.gmra.mxu0 %v276
    %v680 = vpop.f32.mrf.mxu0
    %v681 = vadd.f32 0.0, %v680
    %682 = vmatmul.f32.gmra.mxu0 %v279
    %v683 = vpop.f32.mrf.mxu0
    %v684 = vadd.f32 0.0, %v683
    %685 = vmatmul.f32.gmra.mxu0 %v282
    %v686 = vpop.f32.mrf.mxu0
    %v687 = vadd.f32 0.0, %v686
    %688 = vmatmul.f32.gmra.mxu0 %v285
    %v689 = vpop.f32.mrf.mxu0
    %v690 = vadd.f32 0.0, %v689
    %691 = vmatmul.f32.gmra.mxu0 %v288
    %v692 = vpop.f32.mrf.mxu0
    %v693 = vadd.f32 0.0, %v692
    %694 = vmatmul.f32.gmra.mxu0 %v291
    %v695 = vpop.f32.mrf.mxu0
    %v696 = vadd.f32 0.0, %v695
    %697 = vdwg.mxu0
    %698 = vmatpush.msra.mxu0 %v501
    %699 = vmatpush.msra.mxu0 %v499
    %700 = vmatpush.msra.mxu0 %v497
    %701 = vmatpush.msra.mxu0 %v495
    %702 = vmatpush.msra.mxu0 %v493
    %703 = vmatpush.msra.mxu0 %v491
    %704 = vmatpush.msra.mxu0 %v489
    %705 = vmatpush.msra.mxu0 %v487
    %706 = vmatpush.msra.mxu0 %v485
    %707 = vmatpush.msra.mxu0 %v483
    %708 = vmatpush.msra.mxu0 %v481
    %709 = vmatpush.msra.mxu0 %v479
    %710 = vmatpush.msra.mxu0 %v477
    %711 = vmatpush.msra.mxu0 %v475
    %712 = vmatpush.msra.mxu0 %v473
    %713 = vmatpush.msra.mxu0 %v471
    %714 = vmatmul.f32.gmra.mxu0 %v271
    %v715 = vpop.f32.mrf.mxu0
    %v716 = vadd.f32 %v675, %v715
    %717 = vmatmul.f32.gmra.mxu0 %v274
    %v718 = vpop.f32.mrf.mxu0
    %v719 = vadd.f32 %v678, %v718
    %720 = vmatmul.f32.gmra.mxu0 %v277
    %v721 = vpop.f32.mrf.mxu0
    %v722 = vadd.f32 %v681, %v721
    %723 = vmatmul.f32.gmra.mxu0 %v280
    %v724 = vpop.f32.mrf.mxu0
    %v725 = vadd.f32 %v684, %v724
    %726 = vmatmul.f32.gmra.mxu0 %v283
    %v727 = vpop.f32.mrf.mxu0
    %v728 = vadd.f32 %v687, %v727
    %729 = vmatmul.f32.gmra.mxu0 %v286
    %v730 = vpop.f32.mrf.mxu0
    %v731 = vadd.f32 %v690, %v730
    %732 = vmatmul.f32.gmra.mxu0 %v289
    %v733 = vpop.f32.mrf.mxu0
    %v734 = vadd.f32 %v693, %v733
    %735 = vmatmul.f32.gmra.mxu0 %v292
    %v736 = vpop.f32.mrf.mxu0
    %v737 = vadd.f32 %v696, %v736
    %738 = vdwg.mxu0
    %739 = vmatpush.msra.mxu0 %v533
    %740 = vmatpush.msra.mxu0 %v531
    %741 = vmatpush.msra.mxu0 %v529
    %742 = vmatpush.msra.mxu0 %v527
    %743 = vmatpush.msra.mxu0 %v525
    %744 = vmatpush.msra.mxu0 %v523
    %745 = vmatpush.msra.mxu0 %v521
    %746 = vmatpush.msra.mxu0 %v519
    %747 = vmatpush.msra.mxu0 %v517
    %748 = vmatpush.msra.mxu0 %v515
    %749 = vmatpush.msra.mxu0 %v513
    %750 = vmatpush.msra.mxu0 %v511
    %751 = vmatpush.msra.mxu0 %v509
    %752 = vmatpush.msra.mxu0 %v507
    %753 = vmatpush.msra.mxu0 %v505
    %754 = vmatpush.msra.mxu0 %v503
    %755 = vmatmul.f32.gmra.mxu0 %v272
    %v756 = vpop.f32.mrf.mxu0
    %v757 = vadd.f32 %v716, %v756
    %758 = vmatmul.f32.gmra.mxu0 %v275
    %v759 = vpop.f32.mrf.mxu0
    %v760 = vadd.f32 %v719, %v759
    %761 = vmatmul.f32.gmra.mxu0 %v278
    %v762 = vpop.f32.mrf.mxu0
    %v763 = vadd.f32 %v722, %v762
    %764 = vmatmul.f32.gmra.mxu0 %v281
    %v765 = vpop.f32.mrf.mxu0
    %v766 = vadd.f32 %v725, %v765
    %767 = vmatmul.f32.gmra.mxu0 %v284
    %v768 = vpop.f32.mrf.mxu0
    %v769 = vadd.f32 %v728, %v768
    %770 = vmatmul.f32.gmra.mxu0 %v287
    %v771 = vpop.f32.mrf.mxu0
    %v772 = vadd.f32 %v731, %v771
    %773 = vmatmul.f32.gmra.mxu0 %v290
    %v774 = vpop.f32.mrf.mxu0
    %v775 = vadd.f32 %v734, %v774
    %776 = vmatmul.f32.gmra.mxu0 %v293
    %v777 = vpop.f32.mrf.mxu0
    %v778 = vadd.f32 %v737, %v777
    %779 = vdwg.mxu0
    %v780 = vmul.f32 %v634, %v367
    %v781 = vmul.f32 %v757, %v367
    %v782 = vmul.f32 %v637, %v377
    %v783 = vmul.f32 %v760, %v377
    %v784 = vmul.f32 %v640, %v387
    %v785 = vmul.f32 %v763, %v387
    %v786 = vmul.f32 %v643, %v397
    %v787 = vmul.f32 %v766, %v397
    %v788 = vmul.f32 %v646, %v407
    %v789 = vmul.f32 %v769, %v407
    %v790 = vmul.f32 %v649, %v417
    %v791 = vmul.f32 %v772, %v417
    %v792 = vmul.f32 %v652, %v427
    %v793 = vmul.f32 %v775, %v427
    %v794 = vmul.f32 %v655, %v437
    %v795 = vmul.f32 %v778, %v437
    %v797 = vperm.slane %v100, 0
    %v798 = vperm.slane %v100, 1
    %v801 = vadd.f32 %v780, %v797
    %v802 = vadd.f32 %v781, %v798
    %v803 = vadd.f32 %v782, %v797
    %v804 = vadd.f32 %v783, %v798
    %v805 = vadd.f32 %v784, %v797
    %v806 = vadd.f32 %v785, %v798
    %v807 = vadd.f32 %v786, %v797
    %v808 = vadd.f32 %v787, %v798
    %v809 = vadd.f32 %v788, %v797
    %v810 = vadd.f32 %v789, %v798
    %v811 = vadd.f32 %v790, %v797
    %v812 = vadd.f32 %v791, %v798
    %v813 = vadd.f32 %v792, %v797
    %v814 = vadd.f32 %v793, %v798
    %v815 = vadd.f32 %v794, %v797
    %v816 = vadd.f32 %v795, %v798
    %818 = vset.pattern.permute.xlu0 0
    %819 = vperm.xlu0 %818, %v87
    %v820 = vpop.permute.xlu0 %819
    %822 = vset.pattern.permute.xlu0 0
    %823 = vperm.xlu0 %822, %v88
    %v824 = vpop.permute.xlu0 %823
    %826 = vset.pattern.permute.xlu0 0
    %827 = vperm.xlu0 %826, %v89
    %v828 = vpop.permute.xlu0 %827
    %830 = vset.pattern.permute.xlu0 0
    %831 = vperm.xlu0 %830, %v90
    %v832 = vpop.permute.xlu0 %831
    %834 = vset.pattern.permute.xlu0 0
    %835 = vperm.xlu0 %834, %v91
    %v836 = vpop.permute.xlu0 %835
    %838 = vset.pattern.permute.xlu0 0
    %839 = vperm.xlu0 %838, %v92
    %v840 = vpop.permute.xlu0 %839
    %842 = vset.pattern.permute.xlu0 0
    %843 = vperm.xlu0 %842, %v93
    %v844 = vpop.permute.xlu0 %843
    %846 = vset.pattern.permute.xlu0 0
    %847 = vperm.xlu0 %846, %v94
    %v848 = vpop.permute.xlu0 %847
    %850 = vset.pattern.permute.xlu0 0
    %851 = vperm.xlu0 %850, %v95
    %v852 = vpop.permute.xlu0 %851
    %v853 = vrot.slane %v820, 6
    %v854 = vrot.slane %v824, 6
    %v855 = vsel %vm251, %v853, %v854
    %v856 = vrot.slane %v828, 6
    %v857 = vsel %vm251, %v854, %v856
    %v858 = vrot.slane %v832, 6
    %v859 = vsel %vm251, %v856, %v858
    %v860 = vrot.slane %v836, 6
    %v861 = vsel %vm251, %v858, %v860
    %v862 = vrot.slane %v840, 6
    %v863 = vsel %vm251, %v860, %v862
    %v864 = vrot.slane %v844, 6
    %v865 = vsel %vm251, %v862, %v864
    %v866 = vrot.slane %v848, 6
    %v867 = vsel %vm251, %v864, %v866
    %v868 = vrot.slane %v852, 6
    %v869 = vsel %vm251, %v866, %v868
    %v878 = vadd.f32 %v801, %v855
    %v879 = vadd.f32 %v802, %v855
    %v880 = vadd.f32 %v803, %v857
    %v881 = vadd.f32 %v804, %v857
    %v882 = vadd.f32 %v805, %v859
    %v883 = vadd.f32 %v806, %v859
    %v884 = vadd.f32 %v807, %v861
    %v885 = vadd.f32 %v808, %v861
    %v886 = vadd.f32 %v809, %v863
    %v887 = vadd.f32 %v810, %v863
    %v888 = vadd.f32 %v811, %v865
    %v889 = vadd.f32 %v812, %v865
    %v890 = vadd.f32 %v813, %v867
    %v891 = vadd.f32 %v814, %v867
    %v892 = vadd.f32 %v815, %v869
    %v893 = vadd.f32 %v816, %v869
    %vm894 = vcmp.ge.f32.partialorder %v878, 0.0
    %vm895 = vcmp.ge.f32.partialorder %v879, 0.0
    %vm896 = vcmp.ge.f32.partialorder %v880, 0.0
    %vm897 = vcmp.ge.f32.partialorder %v881, 0.0
    %vm898 = vcmp.ge.f32.partialorder %v882, 0.0
    %vm899 = vcmp.ge.f32.partialorder %v883, 0.0
    %vm900 = vcmp.ge.f32.partialorder %v884, 0.0
    %vm901 = vcmp.ge.f32.partialorder %v885, 0.0
    %vm902 = vcmp.ge.f32.partialorder %v886, 0.0
    %vm903 = vcmp.ge.f32.partialorder %v887, 0.0
    %vm904 = vcmp.ge.f32.partialorder %v888, 0.0
    %vm905 = vcmp.ge.f32.partialorder %v889, 0.0
    %vm906 = vcmp.ge.f32.partialorder %v890, 0.0
    %vm907 = vcmp.ge.f32.partialorder %v891, 0.0
    %vm908 = vcmp.ge.f32.partialorder %v892, 0.0
    %vm909 = vcmp.ge.f32.partialorder %v893, 0.0
    %v910 = vmul.f32 %v878, 0.2
    %v911 = vmul.f32 %v879, 0.2
    %v912 = vmul.f32 %v880, 0.2
    %v913 = vmul.f32 %v881, 0.2
    %v914 = vmul.f32 %v882, 0.2
    %v915 = vmul.f32 %v883, 0.2
    %v916 = vmul.f32 %v884, 0.2
    %v917 = vmul.f32 %v885, 0.2
    %v918 = vmul.f32 %v886, 0.2
    %v919 = vmul.f32 %v887, 0.2
    %v920 = vmul.f32 %v888, 0.2
    %v921 = vmul.f32 %v889, 0.2
    %v922 = vmul.f32 %v890, 0.2
    %v923 = vmul.f32 %v891, 0.2
    %v924 = vmul.f32 %v892, 0.2
    %v925 = vmul.f32 %v893, 0.2
    %v926 = vsel %vm894, %v878, %v910
    %v927 = vsel %vm895, %v879, %v911
    %v928 = vsel %vm896, %v880, %v912
    %v929 = vsel %vm897, %v881, %v913
    %v930 = vsel %vm898, %v882, %v914
    %v931 = vsel %vm899, %v883, %v915
    %v932 = vsel %vm900, %v884, %v916
    %v933 = vsel %vm901, %v885, %v917
    %v934 = vsel %vm902, %v886, %v918
    %v935 = vsel %vm903, %v887, %v919
    %v936 = vsel %vm904, %v888, %v920
    %v937 = vsel %vm905, %v889, %v921
    %v938 = vsel %vm906, %v890, %v922
    %v939 = vsel %vm907, %v891, %v923
    %v940 = vsel %vm908, %v892, %v924
    %v941 = vsel %vm909, %v893, %v925
    %v942 = vmul.f32 %v926, 1.4142135
    %v943 = vmul.f32 %v927, 1.4142135
    %v944 = vmul.f32 %v928, 1.4142135
    %v945 = vmul.f32 %v929, 1.4142135
    %v946 = vmul.f32 %v930, 1.4142135
    %v947 = vmul.f32 %v931, 1.4142135
    %v948 = vmul.f32 %v932, 1.4142135
    %v949 = vmul.f32 %v933, 1.4142135
    %v950 = vmul.f32 %v934, 1.4142135
    %v951 = vmul.f32 %v935, 1.4142135
    %v952 = vmul.f32 %v936, 1.4142135
    %v953 = vmul.f32 %v937, 1.4142135
    %v954 = vmul.f32 %v938, 1.4142135
    %v955 = vmul.f32 %v939, 1.4142135
    %v956 = vmul.f32 %v940, 1.4142135
    %v957 = vmul.f32 %v941, 1.4142135
    %958 = vst [vmem:[#allocation8] sm:$0xff] %v942
    %959 = vst [vmem:[#allocation8 + $0x8] sm:$0xff] %v943
    %960 = vst [vmem:[#allocation8 + $0x10] sm:$0xff] %v944
    %961 = vst [vmem:[#allocation8 + $0x18] sm:$0xff] %v945
    %962 = vst [vmem:[#allocation8 + $0x20] sm:$0xff] %v946
    %963 = vst [vmem:[#allocation8 + $0x28] sm:$0xff] %v947
    %964 = vst [vmem:[#allocation8 + $0x30] sm:$0xff] %v948
    %965 = vst [vmem:[#allocation8 + $0x38] sm:$0xff] %v949
    %966 = vst [vmem:[#allocation8 + $0x40] sm:$0xff] %v950
    %967 = vst [vmem:[#allocation8 + $0x48] sm:$0xff] %v951
    %968 = vst [vmem:[#allocation8 + $0x50] sm:$0xff] %v952
    %969 = vst [vmem:[#allocation8 + $0x58] sm:$0xff] %v953
    %970 = vst [vmem:[#allocation8 + $0x60] sm:$0xff] %v954
    %971 = vst [vmem:[#allocation8 + $0x68] sm:$0xff] %v955
    %972 = vst [vmem:[#allocation8 + $0x70] sm:$0xff] %v956
    %973 = vst [vmem:[#allocation8 + $0x78] sm:$0xff] %v957
    %v975 = vrot.slane %v217, 1
    %v976 = vperm.slane %v217, 0
    %v977 = vperm.slane %v975, 0
    %v980 = vmul.f32 %v86, %v976
    %v981 = vmul.f32 %v86, %v977
    %984 = vst [vmem:[#allocation1] sm:$0xff] %v980
    %s985 = scalar_lea.vmem [#allocation1], 3
    %v986 = vld [vmem:[%s985] ss:$9 sm:$0xff]
    %s987 = scalar_lea.vmem [#allocation1], 4
    %v988 = vld [vmem:[%s987] ss:$9 sm:$0xff]
    %s989 = scalar_lea.vmem [#allocation1], 5
    %v990 = vld [vmem:[%s989] ss:$9 sm:$0xff]
    %991 = vst [vmem:[#allocation1] sm:$0xff] %v981
    %v992 = vld [vmem:[%s985] ss:$9 sm:$0xff]
    %v993 = vld [vmem:[%s987] ss:$9 sm:$0xff]
    %v994 = vld [vmem:[%s989] ss:$9 sm:$0xff]
    %995 = vst [vmem:[#allocation1] ss:$9 sm:$0xff] %v986
    %s996 = scalar_lea.vmem [#allocation1], 1
    %997 = vst [vmem:[%s996] ss:$9 sm:$0xff] %v988
    %s998 = scalar_lea.vmem [#allocation1], 2
    %999 = vst [vmem:[%s998] ss:$9 sm:$0xff] %v990
    %s1000 = scalar_lea.vmem [#allocation1], 3
    %1001 = vst [vmem:[%s1000] ss:$9 sm:$0xff] %v992
    %s1002 = scalar_lea.vmem [#allocation1], 4
    %1003 = vst [vmem:[%s1002] ss:$9 sm:$0xff] %v993
    %s1004 = scalar_lea.vmem [#allocation1], 5
    %1005 = vst [vmem:[%s1004] ss:$9 sm:$0xff] %v994
    %v1006 = vld [vmem:[#allocation1] sm:$0xff]
    %1008 = vst [vmem:[#allocation1] ss:$9 sm:$0xff] %v986
    %s1009 = scalar_lea.vmem [#allocation1], 1
    %1010 = vst [vmem:[%s1009] ss:$9 sm:$0xff] %v988
    %s1011 = scalar_lea.vmem [#allocation1], 2
    %1012 = vst [vmem:[%s1011] ss:$9 sm:$0xff] %v990
    %s1013 = scalar_lea.vmem [#allocation1], 3
    %1014 = vst [vmem:[%s1013] ss:$9 sm:$0xff] %v992
    %s1015 = scalar_lea.vmem [#allocation1], 4
    %1016 = vst [vmem:[%s1015] ss:$9 sm:$0xff] %v993
    %s1017 = scalar_lea.vmem [#allocation1], 5
    %1018 = vst [vmem:[%s1017] ss:$9 sm:$0xff] %v994
    %v1019 = vld [vmem:[#allocation1] sm:$0xff]
    %1020 = vrot.lane.b32.xlu0 %v1019, 32
    %v1021 = vpop.permute.xlu0 %1020
    %v1023 = vsel %vm229, %v1006, %v1021
    %1025 = vset.pattern.permute.xlu0 1
    %1026 = vperm.xlu0 %1025, %v96
    %v1027 = vpop.permute.xlu0 %1026
    %1030 = vset.pattern.permute.xlu0 1
    %1031 = vperm.xlu0 %1030, %v97
    %v1032 = vpop.permute.xlu0 %1031
    %vm1034 = vcmp.eq.f32.partialorder %v1027, %v98
    %vm1035 = vcmp.eq.f32.partialorder %v1032, %v98
    %v1037 = vrot.slane %v1023, 2
    %v1039 = vsel %vm1034, %v1037, 0.0
    %v1040 = vsel %vm1035, %v1037, 0.0
    %1041 = vset.pattern.permute.xlu0 0
    %1042 = vperm.xlu0 %1041, %v96
    %v1043 = vpop.permute.xlu0 %1042
    %1044 = vset.pattern.permute.xlu0 0
    %1045 = vperm.xlu0 %1044, %v97
    %v1046 = vpop.permute.xlu0 %1045
    %v1049 = vrot.slane %v1039, 6
    %v1050 = vrot.slane %v1040, 6
    %v1051 = vsel %vm251, %v1049, %v1050
    %v1052 = vrot.slane %v1043, 6
    %v1053 = vrot.slane %v1046, 6
    %v1054 = vsel %vm251, %v1052, %v1053
    %v1056 = vsel %vm175, %v1051, 0
    %1058 = vmatpush.msra.mxu0 0.0
    %1059 = vmatpush.msra.mxu0 0.0
    %1060 = vmatpush.msra.mxu0 0.0
    %1061 = vmatpush.msra.mxu0 0.0
    %1062 = vmatpush.msra.mxu0 0.0
    %1063 = vmatpush.msra.mxu0 0.0
    %1064 = vmatpush.msra.mxu0 0.0
    %1065 = vmatpush.msra.mxu0 0.0
    %1066 = vmatpush.msra.mxu0 %v956
    %1067 = vmatpush.msra.mxu0 %v954
    %1068 = vmatpush.msra.mxu0 %v952
    %1069 = vmatpush.msra.mxu0 %v950
    %1070 = vmatpush.msra.mxu0 %v948
    %1071 = vmatpush.msra.mxu0 %v946
    %1072 = vmatpush.msra.mxu0 %v944
    %1073 = vmatpush.msra.mxu0 %v942
    %1074 = vmatmul.f32.gmra.mxu0 %v1056
    %v1075 = vpop.f32.mrf.mxu0
    %v1076 = vadd.f32 %v1054, %v1075
    %1077 = vdwg.mxu0
    %1078 = vmatpush.msra.mxu0 0.0
    %1079 = vmatpush.msra.mxu0 0.0
    %1080 = vmatpush.msra.mxu0 0.0
    %1081 = vmatpush.msra.mxu0 0.0
    %1082 = vmatpush.msra.mxu0 0.0
    %1083 = vmatpush.msra.mxu0 0.0
    %1084 = vmatpush.msra.mxu0 0.0
    %1085 = vmatpush.msra.mxu0 0.0
    %1086 = vmatpush.msra.mxu0 %v957
    %1087 = vmatpush.msra.mxu0 %v955
    %1088 = vmatpush.msra.mxu0 %v953
    %1089 = vmatpush.msra.mxu0 %v951
    %1090 = vmatpush.msra.mxu0 %v949
    %1091 = vmatpush.msra.mxu0 %v947
    %1092 = vmatpush.msra.mxu0 %v945
    %1093 = vmatpush.msra.mxu0 %v943
    %1094 = vmatmul.f32.gmra.mxu0 %v1056
    %v1095 = vpop.f32.mrf.mxu0
    %v1096 = vadd.f32 %v1054, %v1095
    %1097 = vdwg.mxu0
    %1098 = vst [vmem:[#allocation9] sm:$0x3f] %v1076
    %1099 = vst [vmem:[#allocation9 + $0x8] sm:$0x3f] %v1096
    // Predicated region
    $region26: #{tpu_custom_call.1} parent=1 // pred_check
      _
    $region27: #{tpu_custom_call.1} parent=1 // pred_check_branch
      %1101 = sbr.rel (0) target = $region29
    $region28: #{tpu_custom_call.1} parent=1 // pred_region
      %1103 = vsyncadd [#allocation4], 0
      %s1104 = sshll.u32 [#allocation8], 4
      %s1105 = int_to_ptr.vmem [resolvable:$true] %s1104
      %s1106 = sshll.u32 %s3, 4
      %s1107 = int_to_ptr.hbm [resolvable:$true] %s1106
      %1112 = dma.vmem_to_hbm [thread:$0]  %s1105, 2048, %s1107, [#allocation4], 256, 256, 16
    $region29: #{tpu_custom_call.1} parent=1 // pred_fallthru
      _
    // Predicated region
    $region30: #{tpu_custom_call.1} parent=1 // pred_check
      _
    $region31: #{tpu_custom_call.1} parent=1 // pred_check_branch
      %1114 = sbr.rel (0) target = $region33
    $region32: #{tpu_custom_call.1} parent=1 // pred_region
      %1116 = vsyncadd [#allocation10], 0
      %s1118 = sshll.u32 [#allocation9], 4
      %s1119 = int_to_ptr.vmem [resolvable:$true] %s1118
      %s1120 = sshll.u32 %s4, 4
      %s1121 = int_to_ptr.hbm [resolvable:$true] %s1120
      %1123 = dma.vmem_to_hbm [thread:$0]  %s1119, 256, %s1121, [#allocation10]
    $region33: #{tpu_custom_call.1} parent=1 // pred_fallthru
      _
    // Predicated region
    $region34: #{tpu_custom_call.1} parent=1 // pred_check
      _
    $region35: #{tpu_custom_call.1} parent=1 // pred_check_branch
      %1125 = sbr.rel (0) target = $region37
    $region36: #{tpu_custom_call.1} parent=1 // pred_region
      %1127 = dma.done [#allocation4], 2048
    $region37: #{tpu_custom_call.1} parent=1 // pred_fallthru
      _
    // Predicated region
    $region38: #{tpu_custom_call.1} parent=1 // pred_check
      _
    $region39: #{tpu_custom_call.1} parent=1 // pred_check_branch
      %1129 = sbr.rel (0) target = $region41
    $region40: #{tpu_custom_call.1} parent=1 // pred_region
      %1131 = dma.done [#allocation10], 256
    $region41: #{tpu_custom_call.1} parent=1 // pred_fallthru
      _
    %1132 = vsyncpa [#allocation3], 1
    %1133 = vsyncpa [#allocation6], 1
    %1134 = vsyncpa [#allocation4], 1
    %1135 = vsyncpa [#allocation10], 1

</llo_original>
